<compile_context>
chip_gen: v6e
topology: v6e:2x2x1
jax: 0.10.0
libtpu: 0.0.40
codegen_flags: <defaults>
</compile_context>

<pallas_src>
import math

import jax
import jax.numpy as jnp
from jax.experimental import pallas as pl
from jax.experimental.pallas import tpu as pltpu

_LANE = 128        # lane width of a vreg
_SUBLANE = 16      # bf16 sublane packing for the batch-tile rows
_MAX_BLOCK_B = 256 # matches 2x256^2 MXU on v6e/v7x; two clean passes on v5e


def _round_up(n, m):
    return pl.cdiv(n, m) * m


# --------------------------------------------------------------------------
# Kernel
# --------------------------------------------------------------------------
def gender_head_kernel(x_ref, w1_ref, b1_ref, w2_ref, b2_ref, w3_ref, b3_ref,
                       o_ref):
    # Layer 1: Linear (+ folded BN1) + ReLU.  Dropout is identity in eval.
    h1 = jnp.dot(x_ref[...], w1_ref[...], preferred_element_type=jnp.float32)
    h1 = jnp.maximum(h1 + b1_ref[...], 0.0)

    # Layer 2: Linear (+ folded BN2) + ReLU.
    h2 = jnp.dot(h1.astype(w2_ref.dtype), w2_ref[...],
                 preferred_element_type=jnp.float32)
    h2 = jnp.maximum(h2 + b2_ref[...], 0.0)

    # Layer 3: final classifier Linear (lane-padded columns carry zero weights
    # and are sliced off outside the kernel).
    logits = jnp.dot(h2.astype(w3_ref.dtype), w3_ref[...],
                     preferred_element_type=jnp.float32) + b3_ref[...]
    o_ref[...] = logits.astype(o_ref.dtype)


# --------------------------------------------------------------------------
# One-time parameter preparation (hoisted out of the per-call path)
# --------------------------------------------------------------------------
def prepare_params(w1, b1, w2, b2, w3, b3):
    """Pad + cast the (BN-folded) weights once at model-load time.

    Returns kernel-ready bf16 weights with:
      * w1 rows zero-padded so the input feature dim is a 128-lane multiple,
      * w3/b3 columns zero-padded so the class dim is a full 128-lane slab,
      * biases reshaped to (1, H) f32 (added to the f32 MXU accumulator).
    """
    F, H1 = w1.shape
    H2 = w2.shape[1]
    C = w3.shape[1]
    Fp = _round_up(F, _LANE)
    Cp = _round_up(C, _LANE)

    w1p = jnp.pad(w1, ((0, Fp - F), (0, 0))).astype(jnp.bfloat16)
    w2b = w2.astype(jnp.bfloat16)
    w3p = jnp.pad(w3, ((0, 0), (0, Cp - C))).astype(jnp.bfloat16)
    b1f = b1.reshape(1, H1).astype(jnp.float32)
    b2f = b2.reshape(1, H2).astype(jnp.float32)
    b3f = jnp.pad(b3.reshape(1, C), ((0, 0), (0, Cp - C))).astype(jnp.float32)

    return {
        "w1": w1p, "b1": b1f,
        "w2": w2b, "b2": b2f,
        "w3": w3p, "b3": b3f,
        "in_features": F, "num_classes": C,
    }


# --------------------------------------------------------------------------
# Per-call wrapper (only x is touched per call)
# --------------------------------------------------------------------------
def proven_gender_head(x, params, *, out_dtype=jnp.float32):
    B, F = x.shape
    assert F == params["in_features"]

    w1, b1 = params["w1"], params["b1"]
    w2, b2 = params["w2"], params["b2"]
    w3, b3 = params["w3"], params["b3"]
    Fp, H1 = w1.shape
    H2 = w2.shape[1]
    Cp = w3.shape[1]
    C = params["num_classes"]

    # Batch tile: one fat block for small batches (grid=(1,)), MXU-matched
    # 256-row tiles otherwise.
    if B <= _MAX_BLOCK_B:
        block_b = max(_SUBLANE, _round_up(B, _SUBLANE))
    else:
        block_b = _MAX_BLOCK_B
    Bp = _round_up(B, block_b)
    n_blocks = Bp // block_b

    # Per-call work on x only: bf16 cast + pad batch rows / feature lanes.
    xb = x.astype(jnp.bfloat16)
    if (Bp != B) or (Fp != F):
        xb = jnp.pad(xb, ((0, Bp - B), (0, Fp - F)))

    # Megacore sharding only pays when there are >= 2 real grid steps.
    dims = ("parallel",) if n_blocks >= 2 else ("arbitrary",)

    flops = 2 * Bp * (Fp * H1 + H1 * H2 + H2 * Cp)
    bytes_accessed = (xb.size * 2
                      + (w1.size + w2.size + w3.size) * 2
                      + (b1.size + b2.size + b3.size) * 4
                      + Bp * Cp * jnp.dtype(out_dtype).itemsize)

    out = pl.pallas_call(
        gender_head_kernel,
        out_shape=jax.ShapeDtypeStruct((Bp, Cp), out_dtype),
        grid=(n_blocks,),
        in_specs=[
            pl.BlockSpec((block_b, Fp), lambda i: (i, 0)),  # x: tiled by batch
            pl.BlockSpec((Fp, H1), lambda i: (0, 0)),       # weights resident
            pl.BlockSpec((1, H1), lambda i: (0, 0)),
            pl.BlockSpec((H1, H2), lambda i: (0, 0)),
            pl.BlockSpec((1, H2), lambda i: (0, 0)),
            pl.BlockSpec((H2, Cp), lambda i: (0, 0)),
            pl.BlockSpec((1, Cp), lambda i: (0, 0)),
        ],
        out_specs=pl.BlockSpec((block_b, Cp), lambda i: (i, 0)),
        compiler_params=pltpu.CompilerParams(dimension_semantics=dims),
        cost_estimate=pl.CostEstimate(
            flops=flops, transcendentals=0, bytes_accessed=bytes_accessed),
    )(xb, w1, b1, w2, b2, w3, b3)

    return out[:B, :C].astype(jnp.float32)


# --------------------------------------------------------------------------
# Synthetic parameters (Linear + eval-mode BN folded into Linear)
# --------------------------------------------------------------------------
def make_params(key, input_features, num_classes=2):
    ks = jax.random.split(key, 14)
    eps = 1e-5

    def linear_init(kw, kb, fan_in, fan_out):
        bound = 1.0 / math.sqrt(fan_in)
        w = jax.random.uniform(kw, (fan_in, fan_out), jnp.float32, -bound, bound)
        b = jax.random.uniform(kb, (fan_out,), jnp.float32, -bound, bound)
        return w, b

    def bn_init(kg, kb, km, kv, n):
        gamma = jax.random.uniform(kg, (n,), jnp.float32, 0.9, 1.1)
        beta = jax.random.uniform(kb, (n,), jnp.float32, -0.1, 0.1)
        mean = jax.random.uniform(km, (n,), jnp.float32, -0.2, 0.2)
        var = jax.random.uniform(kv, (n,), jnp.float32, 0.5, 1.5)
        return gamma, beta, mean, var

    # Layer 1: Linear(input_features, 512) + BN1d(512)
    w1, b1 = linear_init(ks[0], ks[1], input_features, 512)
    g1, bt1, m1, v1 = bn_init(ks[2], ks[3], ks[4], ks[5], 512)
    s1 = g1 / jnp.sqrt(v1 + eps)
    w1f = w1 * s1[None, :]
    b1f = (b1 - m1) * s1 + bt1

    # Layer 2: Linear(512, 256) + BN1d(256)
    w2, b2 = linear_init(ks[6], ks[7], 512, 256)
    g2, bt2, m2, v2 = bn_init(ks[8], ks[9], ks[10], ks[11], 256)
    s2 = g2 / jnp.sqrt(v2 + eps)
    w2f = w2 * s2[None, :]
    b2f = (b2 - m2) * s2 + bt2

    # Layer 3: Linear(256, num_classes) — no BN after it.
    w3, b3 = linear_init(ks[12], ks[13], 256, num_classes)

    return w1f, b1f, w2f, b2f, w3, b3


def reference_forward(x, w1, b1, w2, b2, w3, b3):
    h1 = jnp.maximum(x @ w1 + b1, 0.0)
    h2 = jnp.maximum(h1 @ w2 + b2, 0.0)
    return h2 @ w3 + b3


if __name__ == "__main__":
    key = jax.random.PRNGKey(0)
    kx, kp = jax.random.split(key)

    batch = 24            # deliberately not a multiple of the sublane pack
    input_features = 64   # constructor arg; hidden dims 512/256 are fixed
    num_classes = 2
    x = jax.random.normal(kx, (batch, input_features), jnp.float32)

    folded = make_params(kp, input_features, num_classes)   # BN folded, f32
    prepared = prepare_params(*folded)                       # once, at load

    out = proven_gender_head(x, prepared)
    out = jax.block_until_ready(out)

    ref = reference_forward(x, *folded)
    assert out.shape == (batch, num_classes)
    assert jnp.all(jnp.isfinite(out))
    # bf16 MXU operands with f32 accumulation -> loose tolerance vs f32 ref.
    assert jnp.allclose(out, ref, atol=5e-2, rtol=5e-2), \
        float(jnp.max(jnp.abs(out - ref)))

    print("KERNEL_OK")
</pallas_src>

<mosaic_0001>
module attributes {stable_mosaic.version = 11 : i64} {
  func.func @gender_head_kernel(%arg0: i32, %arg1: memref<32x128xbf16, #tpu.memory_space<vmem>>, %arg2: memref<128x512xbf16, #tpu.memory_space<vmem>>, %arg3: memref<1x512xf32, #tpu.memory_space<vmem>>, %arg4: memref<512x256xbf16, #tpu.memory_space<vmem>>, %arg5: memref<1x256xf32, #tpu.memory_space<vmem>>, %arg6: memref<256x128xbf16, #tpu.memory_space<vmem>>, %arg7: memref<1x128xf32, #tpu.memory_space<vmem>>, %arg8: memref<32x128xf32, #tpu.memory_space<vmem>>) attributes {dimension_semantics = [#tpu.dimension_semantics<arbitrary>], iteration_bounds = array<i64: 1>, scalar_prefetch = 0 : i64, scratch_operands = 0 : i64, tpu.core_type = #tpu.core_type<tc>, window_params = [{transform_indices = @transform_0, window_bounds = array<i64: 32, 128>}, {pipeline_mode = #tpu.pipeline_mode<synchronous>, transform_indices = @transform_1, window_bounds = array<i64: 128, 512>}, {pipeline_mode = #tpu.pipeline_mode<synchronous>, transform_indices = @transform_2, window_bounds = array<i64: 1, 512>}, {pipeline_mode = #tpu.pipeline_mode<synchronous>, transform_indices = @transform_3, window_bounds = array<i64: 512, 256>}, {pipeline_mode = #tpu.pipeline_mode<synchronous>, transform_indices = @transform_4, window_bounds = array<i64: 1, 256>}, {pipeline_mode = #tpu.pipeline_mode<synchronous>, transform_indices = @transform_5, window_bounds = array<i64: 256, 128>}, {pipeline_mode = #tpu.pipeline_mode<synchronous>, transform_indices = @transform_6, window_bounds = array<i64: 1, 128>}, {transform_indices = @transform_7, window_bounds = array<i64: 32, 128>}]} {
    %c0 = arith.constant 0 : index
    %c0_0 = arith.constant 0 : index
    %0 = vector.load %arg1[%c0, %c0_0] : memref<32x128xbf16, #tpu.memory_space<vmem>>, vector<32x128xbf16>
    %c0_1 = arith.constant 0 : index
    %c0_2 = arith.constant 0 : index
    %1 = vector.load %arg2[%c0_1, %c0_2] : memref<128x512xbf16, #tpu.memory_space<vmem>>, vector<128x512xbf16>
    %cst = arith.constant dense<0.000000e+00> : vector<32x512xf32>
    %2 = tpu.matmul %0, %1, %cst {dimension_numbers = #tpu.dot_dimension_numbers<[1], [0], [0], [1], [0, 0, 1, 1], [], []>} : vector<32x128xbf16>, vector<128x512xbf16>, vector<32x512xf32> -> vector<32x512xf32>
    %c0_3 = arith.constant 0 : index
    %c0_4 = arith.constant 0 : index
    %3 = vector.load %arg3[%c0_3, %c0_4] : memref<1x512xf32, #tpu.memory_space<vmem>>, vector<1x512xf32>
    %4 = vector.broadcast %3 : vector<1x512xf32> to vector<32x512xf32>
    %5 = arith.addf %2, %4 : vector<32x512xf32>
    %cst_5 = arith.constant 0.000000e+00 : f32
    %6 = vector.broadcast %cst_5 : f32 to vector<32x512xf32>
    %7 = arith.maximumf %5, %6 : vector<32x512xf32>
    %8 = arith.truncf %7 : vector<32x512xf32> to vector<32x512xbf16>
    %c0_6 = arith.constant 0 : index
    %c0_7 = arith.constant 0 : index
    %9 = vector.load %arg4[%c0_6, %c0_7] : memref<512x256xbf16, #tpu.memory_space<vmem>>, vector<512x256xbf16>
    %cst_8 = arith.constant dense<0.000000e+00> : vector<32x256xf32>
    %10 = tpu.matmul %8, %9, %cst_8 {dimension_numbers = #tpu.dot_dimension_numbers<[1], [0], [0], [1], [0, 0, 1, 1], [], []>} : vector<32x512xbf16>, vector<512x256xbf16>, vector<32x256xf32> -> vector<32x256xf32>
    %c0_9 = arith.constant 0 : index
    %c0_10 = arith.constant 0 : index
    %11 = vector.load %arg5[%c0_9, %c0_10] : memref<1x256xf32, #tpu.memory_space<vmem>>, vector<1x256xf32>
    %12 = vector.broadcast %11 : vector<1x256xf32> to vector<32x256xf32>
    %13 = arith.addf %10, %12 : vector<32x256xf32>
    %cst_11 = arith.constant 0.000000e+00 : f32
    %14 = vector.broadcast %cst_11 : f32 to vector<32x256xf32>
    %15 = arith.maximumf %13, %14 : vector<32x256xf32>
    %16 = arith.truncf %15 : vector<32x256xf32> to vector<32x256xbf16>
    %c0_12 = arith.constant 0 : index
    %c0_13 = arith.constant 0 : index
    %17 = vector.load %arg6[%c0_12, %c0_13] : memref<256x128xbf16, #tpu.memory_space<vmem>>, vector<256x128xbf16>
    %cst_14 = arith.constant dense<0.000000e+00> : vector<32x128xf32>
    %18 = tpu.matmul %16, %17, %cst_14 {dimension_numbers = #tpu.dot_dimension_numbers<[1], [0], [0], [1], [0, 0, 1, 1], [], []>} : vector<32x256xbf16>, vector<256x128xbf16>, vector<32x128xf32> -> vector<32x128xf32>
    %c0_15 = arith.constant 0 : index
    %c0_16 = arith.constant 0 : index
    %19 = vector.load %arg7[%c0_15, %c0_16] : memref<1x128xf32, #tpu.memory_space<vmem>>, vector<1x128xf32>
    %20 = vector.broadcast %19 : vector<1x128xf32> to vector<32x128xf32>
    %21 = arith.addf %18, %20 : vector<32x128xf32>
    %c0_17 = arith.constant 0 : index
    %c0_18 = arith.constant 0 : index
    %22 = vector.load %arg8[%c0_17, %c0_18] : memref<32x128xf32, #tpu.memory_space<vmem>>, vector<32x128xf32>
    tpu.vector_store %arg8[%c0_17, %c0_18], %21 {strides = array<i32>} : memref<32x128xf32, #tpu.memory_space<vmem>>, vector<32x128xf32>,
    return
  }
  func.func @transform_0(%arg0: i32) -> (i32, i32) {
    %c0_i32 = arith.constant 0 : i32
    %c0_i32_0 = arith.constant 0 : i32
    return %arg0, %c0_i32 : i32, i32
  }
  func.func @transform_1(%arg0: i32) -> (i32, i32) {
    %c0_i32 = arith.constant 0 : i32
    %c0_i32_0 = arith.constant 0 : i32
    %c0_i32_1 = arith.constant 0 : i32
    return %c0_i32, %c0_i32_0 : i32, i32
  }
  func.func @transform_2(%arg0: i32) -> (i32, i32) {
    %c0_i32 = arith.constant 0 : i32
    %c0_i32_0 = arith.constant 0 : i32
    %c0_i32_1 = arith.constant 0 : i32
    return %c0_i32, %c0_i32_0 : i32, i32
  }
  func.func @transform_3(%arg0: i32) -> (i32, i32) {
    %c0_i32 = arith.constant 0 : i32
    %c0_i32_0 = arith.constant 0 : i32
    %c0_i32_1 = arith.constant 0 : i32
    return %c0_i32, %c0_i32_0 : i32, i32
  }
  func.func @transform_4(%arg0: i32) -> (i32, i32) {
    %c0_i32 = arith.constant 0 : i32
    %c0_i32_0 = arith.constant 0 : i32
    %c0_i32_1 = arith.constant 0 : i32
    return %c0_i32, %c0_i32_0 : i32, i32
  }
  func.func @transform_5(%arg0: i32) -> (i32, i32) {
    %c0_i32 = arith.constant 0 : i32
    %c0_i32_0 = arith.constant 0 : i32
    %c0_i32_1 = arith.constant 0 : i32
    return %c0_i32, %c0_i32_0 : i32, i32
  }
  func.func @transform_6(%arg0: i32) -> (i32, i32) {
    %c0_i32 = arith.constant 0 : i32
    %c0_i32_0 = arith.constant 0 : i32
    %c0_i32_1 = arith.constant 0 : i32
    return %c0_i32, %c0_i32_0 : i32, i32
  }
  func.func @transform_7(%arg0: i32) -> (i32, i32) {
    %c0_i32 = arith.constant 0 : i32
    %c0_i32_0 = arith.constant 0 : i32
    return %arg0, %c0_i32 : i32, i32
  }
}

</mosaic_0001>

<llo_original>
// kernel: tpu_custom_call.1
$region0: #{tpu_custom_call.1}
  #allocation0 [shape = 'u32[]', space=smem, size = 0x4, offset = 0x4, fixed_abs, tag = 'smem constant byte address 0x4 - core index']
  #allocation1 [shape = 'u32[144,128]{1,0:T(1,128)}', space=vmem, size = 0x12000, scoped, tag = 'internal scratch']
  %s0 = inlined_call_operand.hbm [shape: bf16[32,128], index: 0, kind: input, shape index: {}]
  %s1 = inlined_call_operand.hbm [shape: bf16[128,512], index: 1, kind: input, shape index: {}]
  %s2 = inlined_call_operand.hbm [shape: f32[1,512], index: 2, kind: input, shape index: {}]
  %s3 = inlined_call_operand.hbm [shape: bf16[512,256], index: 3, kind: input, shape index: {}]
  %s4 = inlined_call_operand.vmem [shape: f32[1,256], index: 4, kind: input, shape index: {}]
  %s5 = inlined_call_operand.hbm [shape: bf16[256,128], index: 5, kind: input, shape index: {}]
  %s6 = inlined_call_operand.vmem [shape: f32[1,128], index: 6, kind: input, shape index: {}]
  %s7 = inlined_call_operand.hbm [shape: f32[32,128], index: 7, kind: output, shape index: {}]
  %s8 = sld [smem:[#allocation0]]
  $region58: #{tpu_custom_call.1} parent=0
    _
  %s10 = ssub.s32 1, %s8
  %s11 = scalar_select 0, %s10, %s8
  $region1: #{tpu_custom_call.1} parent=0
    #allocation2 [shape = 'u8[8192]{0}', space=vmem, size = 0x2000, scoped, tag = 'input window, operand 0, single buffered']
    #allocation3 [shape = 's32[1]{0}', space=sflag, size = 0x4, scoped, tag = 'scoped memory for tpu_custom_call.1']
    #allocation4 [shape = 's32[1]{0}', space=sflag, size = 0x4, scoped, tag = 'scoped memory for tpu_custom_call.1']
    #allocation5 [shape = 'u8[131072]{0}', space=vmem, size = 0x20000, scoped, tag = 'input window, operand 1, single buffered']
    #allocation6 [shape = 's32[1]{0}', space=sflag, size = 0x4, scoped, tag = 'scoped memory for tpu_custom_call.1']
    #allocation7 [shape = 'u8[2048]{0}', space=vmem, size = 0x800, scoped, tag = 'input window, operand 2, single buffered']
    #allocation8 [shape = 'u8[262144]{0}', space=vmem, size = 0x40000, scoped, tag = 'input window, operand 3, single buffered']
    #allocation9 [shape = 's32[1]{0}', space=sflag, size = 0x4, scoped, tag = 'scoped memory for tpu_custom_call.1']
    #allocation10 [shape = 'u8[65536]{0}', space=vmem, size = 0x10000, scoped, tag = 'input window, operand 5, single buffered']
    #allocation11 [shape = 'u8[16384]{0}', space=vmem, size = 0x4000, scoped, tag = 'output window, operand 0, single buffered']
    %12 = vsyncpa [#allocation3], 0
    %13 = vsyncpa [#allocation6], 0
    %14 = vsyncpa [#allocation9], 0
    %15 = vsyncpa [#allocation4], 0
    // Predicated region
    $region2: #{tpu_custom_call.1} parent=1 // pred_check
      _
    $region3: #{tpu_custom_call.1} parent=1 // pred_check_branch
      %17 = sbr.rel (0) target = $region5
    $region4: #{tpu_custom_call.1} parent=1 // pred_region
      %s19 = ssub.s32 256, 256
      %20 = vsyncadd [#allocation3], %s19
      %s21 = sshll.u32 [#allocation2], 4
      %s22 = int_to_ptr.vmem [resolvable:$true] %s21
      %27 = dma.hbm_to_vmem [thread:$0]  %s0, 256, %s22, [#allocation3], 64, 64, 4
    $region5: #{tpu_custom_call.1} parent=1 // pred_fallthru
      _
    // Predicated region
    $region6: #{tpu_custom_call.1} parent=1 // pred_check
      _
    $region7: #{tpu_custom_call.1} parent=1 // pred_check_branch
      %29 = sbr.rel (0) target = $region9
    $region8: #{tpu_custom_call.1} parent=1 // pred_region
      %s31 = ssub.s32 4096, 4096
      %32 = vsyncadd [#allocation6], %s31
      %s33 = sshll.u32 [#allocation5], 4
      %s34 = int_to_ptr.vmem [resolvable:$true] %s33
      %39 = dma.hbm_to_vmem [thread:$0]  %s1, 4096, %s34, [#allocation6], 256, 256, 16
    $region9: #{tpu_custom_call.1} parent=1 // pred_fallthru
      _
    // Predicated region
    $region10: #{tpu_custom_call.1} parent=1 // pred_check
      _
    $region11: #{tpu_custom_call.1} parent=1 // pred_check_branch
      %41 = sbr.rel (0) target = $region13
    $region12: #{tpu_custom_call.1} parent=1 // pred_region
      %s43 = ssub.s32 64, 64
      %44 = vsyncadd [#allocation6], %s43
      %s46 = sshll.u32 [#allocation7], 4
      %s47 = int_to_ptr.vmem [resolvable:$true] %s46
      %49 = dma.hbm_to_vmem [thread:$0]  %s2, 64, %s47, [#allocation6]
    $region13: #{tpu_custom_call.1} parent=1 // pred_fallthru
      _
    // Predicated region
    $region14: #{tpu_custom_call.1} parent=1 // pred_check
      _
    $region15: #{tpu_custom_call.1} parent=1 // pred_check_branch
      %51 = sbr.rel (0) target = $region17
    $region16: #{tpu_custom_call.1} parent=1 // pred_region
      %s53 = ssub.s32 8192, 8192
      %54 = vsyncadd [#allocation9], %s53
      %s55 = sshll.u32 [#allocation8], 4
      %s56 = int_to_ptr.vmem [resolvable:$true] %s55
      %61 = dma.hbm_to_vmem [thread:$0]  %s3, 8192, %s56, [#allocation9], 128, 128, 8
    $region17: #{tpu_custom_call.1} parent=1 // pred_fallthru
      _
    // Predicated region
    $region18: #{tpu_custom_call.1} parent=1 // pred_check
      _
    $region19: #{tpu_custom_call.1} parent=1 // pred_check_branch
      %63 = sbr.rel (0) target = $region21
    $region20: #{tpu_custom_call.1} parent=1 // pred_region
      _
    $region21: #{tpu_custom_call.1} parent=1 // pred_fallthru
      _
    // Predicated region
    $region22: #{tpu_custom_call.1} parent=1 // pred_check
      _
    $region23: #{tpu_custom_call.1} parent=1 // pred_check_branch
      %65 = sbr.rel (0) target = $region25
    $region24: #{tpu_custom_call.1} parent=1 // pred_region
      %s67 = ssub.s32 2048, 2048
      %68 = vsyncadd [#allocation9], %s67
      %s69 = sshll.u32 [#allocation10], 4
      %s70 = int_to_ptr.vmem [resolvable:$true] %s69
      %75 = dma.hbm_to_vmem [thread:$0]  %s5, 2048, %s70, [#allocation9], 64, 64, 4
    $region25: #{tpu_custom_call.1} parent=1 // pred_fallthru
      _
    // Predicated region
    $region26: #{tpu_custom_call.1} parent=1 // pred_check
      _
    $region27: #{tpu_custom_call.1} parent=1 // pred_check_branch
      %77 = sbr.rel (0) target = $region29
    $region28: #{tpu_custom_call.1} parent=1 // pred_region
      _
    $region29: #{tpu_custom_call.1} parent=1 // pred_fallthru
      _
    // Predicated region
    $region30: #{tpu_custom_call.1} parent=1 // pred_check
      _
    $region31: #{tpu_custom_call.1} parent=1 // pred_check_branch
      %79 = sbr.rel (0) target = $region33
    $region32: #{tpu_custom_call.1} parent=1 // pred_region
      %80 = dma.done [#allocation3], 256
    $region33: #{tpu_custom_call.1} parent=1 // pred_fallthru
      _
    // Predicated region
    $region34: #{tpu_custom_call.1} parent=1 // pred_check
      _
    $region35: #{tpu_custom_call.1} parent=1 // pred_check_branch
      %82 = sbr.rel (0) target = $region37
    $region36: #{tpu_custom_call.1} parent=1 // pred_region
      %83 = dma.done [#allocation6], 4096
    $region37: #{tpu_custom_call.1} parent=1 // pred_fallthru
      _
    // Predicated region
    $region38: #{tpu_custom_call.1} parent=1 // pred_check
      _
    $region39: #{tpu_custom_call.1} parent=1 // pred_check_branch
      %85 = sbr.rel (0) target = $region41
    $region40: #{tpu_custom_call.1} parent=1 // pred_region
      %86 = dma.done [#allocation6], 64
    $region41: #{tpu_custom_call.1} parent=1 // pred_fallthru
      _
    // Predicated region
    $region42: #{tpu_custom_call.1} parent=1 // pred_check
      _
    $region43: #{tpu_custom_call.1} parent=1 // pred_check_branch
      %88 = sbr.rel (0) target = $region45
    $region44: #{tpu_custom_call.1} parent=1 // pred_region
      %89 = dma.done [#allocation9], 8192
    $region45: #{tpu_custom_call.1} parent=1 // pred_fallthru
      _
    // Predicated region
    $region46: #{tpu_custom_call.1} parent=1 // pred_check
      _
    $region47: #{tpu_custom_call.1} parent=1 // pred_check_branch
      %91 = sbr.rel (0) target = $region49
    $region48: #{tpu_custom_call.1} parent=1 // pred_region
      %92 = dma.done [#allocation9], 2048
    $region49: #{tpu_custom_call.1} parent=1 // pred_fallthru
      _
    %v94 = vld [vmem:[#allocation2] sm:$0xf]
    %v95 = vld [vmem:[#allocation2 + $0x4] sm:$0xf]
    %v96 = vld [vmem:[#allocation2 + $0x8] sm:$0xf]
    %v97 = vld [vmem:[#allocation2 + $0xc] sm:$0xf]
    %v98 = vld [vmem:[#allocation5] sm:$0xff]
    %v99 = vld [vmem:[#allocation5 + $0x8] sm:$0xff]
    %v100 = vld [vmem:[#allocation5 + $0x10] sm:$0xff]
    %v101 = vld [vmem:[#allocation5 + $0x18] sm:$0xff]
    %v102 = vld [vmem:[#allocation5 + $0x20] sm:$0xff]
    %v103 = vld [vmem:[#allocation5 + $0x28] sm:$0xff]
    %v104 = vld [vmem:[#allocation5 + $0x30] sm:$0xff]
    %v105 = vld [vmem:[#allocation5 + $0x38] sm:$0xff]
    %v106 = vld [vmem:[#allocation5 + $0x40] sm:$0xff]
    %v107 = vld [vmem:[#allocation5 + $0x48] sm:$0xff]
    %v108 = vld [vmem:[#allocation5 + $0x50] sm:$0xff]
    %v109 = vld [vmem:[#allocation5 + $0x58] sm:$0xff]
    %v110 = vld [vmem:[#allocation5 + $0x60] sm:$0xff]
    %v111 = vld [vmem:[#allocation5 + $0x68] sm:$0xff]
    %v112 = vld [vmem:[#allocation5 + $0x70] sm:$0xff]
    %v113 = vld [vmem:[#allocation5 + $0x78] sm:$0xff]
    %v114 = vld [vmem:[#allocation5 + $0x80] sm:$0xff]
    %v115 = vld [vmem:[#allocation5 + $0x88] sm:$0xff]
    %v116 = vld [vmem:[#allocation5 + $0x90] sm:$0xff]
    %v117 = vld [vmem:[#allocation5 + $0x98] sm:$0xff]
    %v118 = vld [vmem:[#allocation5 + $0xa0] sm:$0xff]
    %v119 = vld [vmem:[#allocation5 + $0xa8] sm:$0xff]
    %v120 = vld [vmem:[#allocation5 + $0xb0] sm:$0xff]
    %v121 = vld [vmem:[#allocation5 + $0xb8] sm:$0xff]
    %v122 = vld [vmem:[#allocation5 + $0xc0] sm:$0xff]
    %v123 = vld [vmem:[#allocation5 + $0xc8] sm:$0xff]
    %v124 = vld [vmem:[#allocation5 + $0xd0] sm:$0xff]
    %v125 = vld [vmem:[#allocation5 + $0xd8] sm:$0xff]
    %v126 = vld [vmem:[#allocation5 + $0xe0] sm:$0xff]
    %v127 = vld [vmem:[#allocation5 + $0xe8] sm:$0xff]
    %v128 = vld [vmem:[#allocation5 + $0xf0] sm:$0xff]
    %v129 = vld [vmem:[#allocation5 + $0xf8] sm:$0xff]
    %v130 = vld [vmem:[#allocation7] sm:$0xf]
    %v132 = vlaneseq
    %v133 = vshrl.u32 %v132, 7
    %v134 = vsub.s32 0, %v133
    %v135 = vrot.slane %v130, %v134
    %v136 = vlaneseq
    %v137 = vshrl.u32 %v136, 7
    %v138 = vsub.s32 1, %v137
    %v139 = vrot.slane %v130, %v138
    %v140 = vlaneseq
    %v141 = vshrl.u32 %v140, 7
    %v142 = vsub.s32 2, %v141
    %v143 = vrot.slane %v130, %v142
    %v144 = vlaneseq
    %v145 = vshrl.u32 %v144, 7
    %v146 = vsub.s32 3, %v145
    %v147 = vrot.slane %v130, %v146
    %v156 = vunpack.c.l.b16 %v94
    %v157 = vunpack.c.l.b16 %v95
    %v158 = vunpack.c.l.b16 %v96
    %v159 = vunpack.c.l.b16 %v97
    %v160 = vpack.c.b16 %v157, %v156
    %v161 = vpack.c.b16 %v159, %v158
    %v196 = vunpack.c.l.b16 %v98
    %v197 = vunpack.c.h.b16 %v98
    %v198 = vunpack.c.l.b16 %v99
    %v199 = vunpack.c.h.b16 %v99
    %v200 = vunpack.c.l.b16 %v100
    %v201 = vunpack.c.h.b16 %v100
    %v202 = vunpack.c.l.b16 %v101
    %v203 = vunpack.c.h.b16 %v101
    %v204 = vunpack.c.l.b16 %v102
    %v205 = vunpack.c.h.b16 %v102
    %v206 = vunpack.c.l.b16 %v103
    %v207 = vunpack.c.h.b16 %v103
    %v208 = vunpack.c.l.b16 %v104
    %v209 = vunpack.c.h.b16 %v104
    %v210 = vunpack.c.l.b16 %v105
    %v211 = vunpack.c.h.b16 %v105
    %v212 = vunpack.c.l.b16 %v106
    %v213 = vunpack.c.h.b16 %v106
    %v214 = vunpack.c.l.b16 %v107
    %v215 = vunpack.c.h.b16 %v107
    %v216 = vunpack.c.l.b16 %v108
    %v217 = vunpack.c.h.b16 %v108
    %v218 = vunpack.c.l.b16 %v109
    %v219 = vunpack.c.h.b16 %v109
    %v220 = vunpack.c.l.b16 %v110
    %v221 = vunpack.c.h.b16 %v110
    %v222 = vunpack.c.l.b16 %v111
    %v223 = vunpack.c.h.b16 %v111
    %v224 = vunpack.c.l.b16 %v112
    %v225 = vunpack.c.h.b16 %v112
    %v226 = vunpack.c.l.b16 %v113
    %v227 = vunpack.c.h.b16 %v113
    %v228 = vunpack.c.l.b16 %v114
    %v229 = vunpack.c.h.b16 %v114
    %v230 = vunpack.c.l.b16 %v115
    %v231 = vunpack.c.h.b16 %v115
    %v232 = vunpack.c.l.b16 %v116
    %v233 = vunpack.c.h.b16 %v116
    %v234 = vunpack.c.l.b16 %v117
    %v235 = vunpack.c.h.b16 %v117
    %v236 = vunpack.c.l.b16 %v118
    %v237 = vunpack.c.h.b16 %v118
    %v238 = vunpack.c.l.b16 %v119
    %v239 = vunpack.c.h.b16 %v119
    %v240 = vunpack.c.l.b16 %v120
    %v241 = vunpack.c.h.b16 %v120
    %v242 = vunpack.c.l.b16 %v121
    %v243 = vunpack.c.h.b16 %v121
    %v244 = vunpack.c.l.b16 %v122
    %v245 = vunpack.c.h.b16 %v122
    %v246 = vunpack.c.l.b16 %v123
    %v247 = vunpack.c.h.b16 %v123
    %v248 = vunpack.c.l.b16 %v124
    %v249 = vunpack.c.h.b16 %v124
    %v250 = vunpack.c.l.b16 %v125
    %v251 = vunpack.c.h.b16 %v125
    %v252 = vunpack.c.l.b16 %v126
    %v253 = vunpack.c.h.b16 %v126
    %v254 = vunpack.c.l.b16 %v127
    %v255 = vunpack.c.h.b16 %v127
    %v256 = vunpack.c.l.b16 %v128
    %v257 = vunpack.c.h.b16 %v128
    %v258 = vunpack.c.l.b16 %v129
    %v259 = vunpack.c.h.b16 %v129
    %v260 = vpack.c.b16 %v200, %v196
    %v261 = vpack.c.b16 %v201, %v197
    %v262 = vpack.c.b16 %v202, %v198
    %v263 = vpack.c.b16 %v203, %v199
    %v264 = vpack.c.b16 %v208, %v204
    %v265 = vpack.c.b16 %v209, %v205
    %v266 = vpack.c.b16 %v210, %v206
    %v267 = vpack.c.b16 %v211, %v207
    %v268 = vpack.c.b16 %v216, %v212
    %v269 = vpack.c.b16 %v217, %v213
    %v270 = vpack.c.b16 %v218, %v214
    %v271 = vpack.c.b16 %v219, %v215
    %v272 = vpack.c.b16 %v224, %v220
    %v273 = vpack.c.b16 %v225, %v221
    %v274 = vpack.c.b16 %v226, %v222
    %v275 = vpack.c.b16 %v227, %v223
    %v276 = vpack.c.b16 %v232, %v228
    %v277 = vpack.c.b16 %v233, %v229
    %v278 = vpack.c.b16 %v234, %v230
    %v279 = vpack.c.b16 %v235, %v231
    %v280 = vpack.c.b16 %v240, %v236
    %v281 = vpack.c.b16 %v241, %v237
    %v282 = vpack.c.b16 %v242, %v238
    %v283 = vpack.c.b16 %v243, %v239
    %v284 = vpack.c.b16 %v248, %v244
    %v285 = vpack.c.b16 %v249, %v245
    %v286 = vpack.c.b16 %v250, %v246
    %v287 = vpack.c.b16 %v251, %v247
    %v288 = vpack.c.b16 %v256, %v252
    %v289 = vpack.c.b16 %v257, %v253
    %v290 = vpack.c.b16 %v258, %v254
    %v291 = vpack.c.b16 %v259, %v255
    %324 = vmatprep.subr.bf16.mxu0 %v289
    %325 = vmatpush1.bf16.msra.mxu0 %v288
    %326 = vmatprep.subr.bf16.mxu0 %v285
    %327 = vmatpush1.bf16.msra.mxu0 %v284
    %328 = vmatprep.subr.bf16.mxu0 %v281
    %329 = vmatpush1.bf16.msra.mxu0 %v280
    %330 = vmatprep.subr.bf16.mxu0 %v277
    %331 = vmatpush1.bf16.msra.mxu0 %v276
    %332 = vmatprep.subr.bf16.mxu0 %v273
    %333 = vmatpush1.bf16.msra.mxu0 %v272
    %334 = vmatprep.subr.bf16.mxu0 %v269
    %335 = vmatpush1.bf16.msra.mxu0 %v268
    %336 = vmatprep.subr.bf16.mxu0 %v265
    %337 = vmatpush1.bf16.msra.mxu0 %v264
    %338 = vmatprep.subr.bf16.mxu0 %v261
    %339 = vmatpush1.bf16.msra.mxu0 %v260
    %340 = vmatprep.subr.bf16.mxu0 0
    %341 = vmatpush2.bf16.msra.mxu0 0
    %342 = vmatprep.subr.bf16.mxu0 0
    %343 = vmatpush2.bf16.msra.mxu0 0
    %344 = vmatprep.subr.bf16.mxu0 0
    %345 = vmatpush2.bf16.msra.mxu0 0
    %346 = vmatprep.subr.bf16.mxu0 0
    %347 = vmatpush2.bf16.msra.mxu0 0
    %348 = vmatprep.subr.bf16.mxu0 0
    %349 = vmatpush2.bf16.msra.mxu0 0
    %350 = vmatprep.subr.bf16.mxu0 0
    %351 = vmatpush2.bf16.msra.mxu0 0
    %352 = vmatprep.subr.bf16.mxu0 0
    %353 = vmatpush2.bf16.msra.mxu0 0
    %354 = vmatprep.subr.bf16.mxu0 0
    %355 = vmatpush2.bf16.msra.mxu0 0
    %356 = vmatprep.mubr.bf16.mxu0 0
    %357 = vmatmul.mubr.bf16.gmra.mxu0 %v160
    %v358 = vpop.f32.mrf.mxu0
    %v359 = vadd.f32 %v135, %v358
    %v360 = vpop.f32.mrf.mxu0
    %v361 = vadd.f32 %v139, %v360
    %v362 = vpop.f32.mrf.mxu0
    %v363 = vadd.f32 %v135, %v362
    %v364 = vpop.f32.mrf.mxu0
    %v365 = vadd.f32 %v139, %v364
    %366 = vmatprep.mubr.bf16.mxu0 0
    %367 = vmatmul.mubr.bf16.gmra.mxu0 %v161
    %v368 = vpop.f32.mrf.mxu0
    %v369 = vadd.f32 %v135, %v368
    %v370 = vpop.f32.mrf.mxu0
    %v371 = vadd.f32 %v139, %v370
    %v372 = vpop.f32.mrf.mxu0
    %v373 = vadd.f32 %v135, %v372
    %v374 = vpop.f32.mrf.mxu0
    %v375 = vadd.f32 %v139, %v374
    %376 = vdwg.mxu0
    %377 = vmatprep.subr.bf16.mxu0 %v291
    %378 = vmatpush1.bf16.msra.mxu0 %v290
    %379 = vmatprep.subr.bf16.mxu0 %v287
    %380 = vmatpush1.bf16.msra.mxu0 %v286
    %381 = vmatprep.subr.bf16.mxu0 %v283
    %382 = vmatpush1.bf16.msra.mxu0 %v282
    %383 = vmatprep.subr.bf16.mxu0 %v279
    %384 = vmatpush1.bf16.msra.mxu0 %v278
    %385 = vmatprep.subr.bf16.mxu0 %v275
    %386 = vmatpush1.bf16.msra.mxu0 %v274
    %387 = vmatprep.subr.bf16.mxu0 %v271
    %388 = vmatpush1.bf16.msra.mxu0 %v270
    %389 = vmatprep.subr.bf16.mxu0 %v267
    %390 = vmatpush1.bf16.msra.mxu0 %v266
    %391 = vmatprep.subr.bf16.mxu0 %v263
    %392 = vmatpush1.bf16.msra.mxu0 %v262
    %393 = vmatprep.subr.bf16.mxu0 0
    %394 = vmatpush2.bf16.msra.mxu0 0
    %395 = vmatprep.subr.bf16.mxu0 0
    %396 = vmatpush2.bf16.msra.mxu0 0
    %397 = vmatprep.subr.bf16.mxu0 0
    %398 = vmatpush2.bf16.msra.mxu0 0
    %399 = vmatprep.subr.bf16.mxu0 0
    %400 = vmatpush2.bf16.msra.mxu0 0
    %401 = vmatprep.subr.bf16.mxu0 0
    %402 = vmatpush2.bf16.msra.mxu0 0
    %403 = vmatprep.subr.bf16.mxu0 0
    %404 = vmatpush2.bf16.msra.mxu0 0
    %405 = vmatprep.subr.bf16.mxu0 0
    %406 = vmatpush2.bf16.msra.mxu0 0
    %407 = vmatprep.subr.bf16.mxu0 0
    %408 = vmatpush2.bf16.msra.mxu0 0
    %409 = vmatprep.mubr.bf16.mxu0 0
    %410 = vmatmul.mubr.bf16.gmra.mxu0 %v160
    %v411 = vpop.f32.mrf.mxu0
    %v412 = vadd.f32 %v143, %v411
    %v413 = vpop.f32.mrf.mxu0
    %v414 = vadd.f32 %v147, %v413
    %v415 = vpop.f32.mrf.mxu0
    %v416 = vadd.f32 %v143, %v415
    %v417 = vpop.f32.mrf.mxu0
    %v418 = vadd.f32 %v147, %v417
    %419 = vmatprep.mubr.bf16.mxu0 0
    %420 = vmatmul.mubr.bf16.gmra.mxu0 %v161
    %v421 = vpop.f32.mrf.mxu0
    %v422 = vadd.f32 %v143, %v421
    %v423 = vpop.f32.mrf.mxu0
    %v424 = vadd.f32 %v147, %v423
    %v425 = vpop.f32.mrf.mxu0
    %v426 = vadd.f32 %v143, %v425
    %v427 = vpop.f32.mrf.mxu0
    %v428 = vadd.f32 %v147, %v427
    %429 = vdwg.mxu0
    %v430 = vmax.f32 %v359, 0.0
    %v431 = vmax.f32 %v361, 0.0
    %v432 = vmax.f32 %v412, 0.0
    %v433 = vmax.f32 %v414, 0.0
    %v434 = vmax.f32 %v363, 0.0
    %v435 = vmax.f32 %v365, 0.0
    %v436 = vmax.f32 %v416, 0.0
    %v437 = vmax.f32 %v418, 0.0
    %v438 = vmax.f32 %v369, 0.0
    %v439 = vmax.f32 %v371, 0.0
    %v440 = vmax.f32 %v422, 0.0
    %v441 = vmax.f32 %v424, 0.0
    %v442 = vmax.f32 %v373, 0.0
    %v443 = vmax.f32 %v375, 0.0
    %v444 = vmax.f32 %v426, 0.0
    %v445 = vmax.f32 %v428, 0.0
    %v446 = vpack.c.bf16 %v434, %v430
    %v447 = vpack.c.bf16 %v435, %v431
    %v448 = vpack.c.bf16 %v436, %v432
    %v449 = vpack.c.bf16 %v437, %v433
    %v450 = vpack.c.bf16 %v442, %v438
    %v451 = vpack.c.bf16 %v443, %v439
    %v452 = vpack.c.bf16 %v444, %v440
    %v453 = vpack.c.bf16 %v445, %v441
    %v454 = vld [vmem:[#allocation8] sm:$0xff]
    %v455 = vld [vmem:[#allocation8 + $0x8] sm:$0xff]
    %v456 = vld [vmem:[#allocation8 + $0x10] sm:$0xff]
    %v457 = vld [vmem:[#allocation8 + $0x18] sm:$0xff]
    %v458 = vld [vmem:[#allocation8 + $0x20] sm:$0xff]
    %v459 = vld [vmem:[#allocation8 + $0x28] sm:$0xff]
    %v460 = vld [vmem:[#allocation8 + $0x30] sm:$0xff]
    %v461 = vld [vmem:[#allocation8 + $0x38] sm:$0xff]
    %v462 = vld [vmem:[#allocation8 + $0x40] sm:$0xff]
    %v463 = vld [vmem:[#allocation8 + $0x48] sm:$0xff]
    %v464 = vld [vmem:[#allocation8 + $0x50] sm:$0xff]
    %v465 = vld [vmem:[#allocation8 + $0x58] sm:$0xff]
    %v466 = vld [vmem:[#allocation8 + $0x60] sm:$0xff]
    %v467 = vld [vmem:[#allocation8 + $0x68] sm:$0xff]
    %v468 = vld [vmem:[#allocation8 + $0x70] sm:$0xff]
    %v469 = vld [vmem:[#allocation8 + $0x78] sm:$0xff]
    %v470 = vld [vmem:[#allocation8 + $0x80] sm:$0xff]
    %v471 = vld [vmem:[#allocation8 + $0x88] sm:$0xff]
    %v472 = vld [vmem:[#allocation8 + $0x90] sm:$0xff]
    %v473 = vld [vmem:[#allocation8 + $0x98] sm:$0xff]
    %v474 = vld [vmem:[#allocation8 + $0xa0] sm:$0xff]
    %v475 = vld [vmem:[#allocation8 + $0xa8] sm:$0xff]
    %v476 = vld [vmem:[#allocation8 + $0xb0] sm:$0xff]
    %v477 = vld [vmem:[#allocation8 + $0xb8] sm:$0xff]
    %v478 = vld [vmem:[#allocation8 + $0xc0] sm:$0xff]
    %v479 = vld [vmem:[#allocation8 + $0xc8] sm:$0xff]
    %v480 = vld [vmem:[#allocation8 + $0xd0] sm:$0xff]
    %v481 = vld [vmem:[#allocation8 + $0xd8] sm:$0xff]
    %v482 = vld [vmem:[#allocation8 + $0xe0] sm:$0xff]
    %v483 = vld [vmem:[#allocation8 + $0xe8] sm:$0xff]
    %v484 = vld [vmem:[#allocation8 + $0xf0] sm:$0xff]
    %v485 = vld [vmem:[#allocation8 + $0xf8] sm:$0xff]
    %v486 = vld [vmem:[#allocation8 + $0x100] sm:$0xff]
    %v487 = vld [vmem:[#allocation8 + $0x108] sm:$0xff]
    %v488 = vld [vmem:[#allocation8 + $0x110] sm:$0xff]
    %v489 = vld [vmem:[#allocation8 + $0x118] sm:$0xff]
    %v490 = vld [vmem:[#allocation8 + $0x120] sm:$0xff]
    %v491 = vld [vmem:[#allocation8 + $0x128] sm:$0xff]
    %v492 = vld [vmem:[#allocation8 + $0x130] sm:$0xff]
    %v493 = vld [vmem:[#allocation8 + $0x138] sm:$0xff]
    %v494 = vld [vmem:[#allocation8 + $0x140] sm:$0xff]
    %v495 = vld [vmem:[#allocation8 + $0x148] sm:$0xff]
    %v496 = vld [vmem:[#allocation8 + $0x150] sm:$0xff]
    %v497 = vld [vmem:[#allocation8 + $0x158] sm:$0xff]
    %v498 = vld [vmem:[#allocation8 + $0x160] sm:$0xff]
    %v499 = vld [vmem:[#allocation8 + $0x168] sm:$0xff]
    %v500 = vld [vmem:[#allocation8 + $0x170] sm:$0xff]
    %v501 = vld [vmem:[#allocation8 + $0x178] sm:$0xff]
    %v502 = vld [vmem:[#allocation8 + $0x180] sm:$0xff]
    %v503 = vld [vmem:[#allocation8 + $0x188] sm:$0xff]
    %v504 = vld [vmem:[#allocation8 + $0x190] sm:$0xff]
    %v505 = vld [vmem:[#allocation8 + $0x198] sm:$0xff]
    %v506 = vld [vmem:[#allocation8 + $0x1a0] sm:$0xff]
    %v507 = vld [vmem:[#allocation8 + $0x1a8] sm:$0xff]
    %v508 = vld [vmem:[#allocation8 + $0x1b0] sm:$0xff]
    %v509 = vld [vmem:[#allocation8 + $0x1b8] sm:$0xff]
    %v510 = vld [vmem:[#allocation8 + $0x1c0] sm:$0xff]
    %v511 = vld [vmem:[#allocation8 + $0x1c8] sm:$0xff]
    %v512 = vld [vmem:[#allocation8 + $0x1d0] sm:$0xff]
    %v513 = vld [vmem:[#allocation8 + $0x1d8] sm:$0xff]
    %v514 = vld [vmem:[#allocation8 + $0x1e0] sm:$0xff]
    %v515 = vld [vmem:[#allocation8 + $0x1e8] sm:$0xff]
    %v516 = vld [vmem:[#allocation8 + $0x1f0] sm:$0xff]
    %v517 = vld [vmem:[#allocation8 + $0x1f8] sm:$0xff]
    %v518 = vld [vmem:[%s4] sm:$0x3]
    %v520 = vlaneseq
    %v521 = vshrl.u32 %v520, 7
    %v522 = vsub.s32 0, %v521
    %v523 = vrot.slane %v518, %v522
    %v524 = vlaneseq
    %v525 = vshrl.u32 %v524, 7
    %v526 = vsub.s32 1, %v525
    %v527 = vrot.slane %v518, %v526
    %v594 = vunpack.c.l.b16 %v454
    %v595 = vunpack.c.h.b16 %v454
    %v596 = vunpack.c.l.b16 %v455
    %v597 = vunpack.c.h.b16 %v455
    %v598 = vunpack.c.l.b16 %v456
    %v599 = vunpack.c.h.b16 %v456
    %v600 = vunpack.c.l.b16 %v457
    %v601 = vunpack.c.h.b16 %v457
    %v602 = vunpack.c.l.b16 %v458
    %v603 = vunpack.c.h.b16 %v458
    %v604 = vunpack.c.l.b16 %v459
    %v605 = vunpack.c.h.b16 %v459
    %v606 = vunpack.c.l.b16 %v460
    %v607 = vunpack.c.h.b16 %v460
    %v608 = vunpack.c.l.b16 %v461
    %v609 = vunpack.c.h.b16 %v461
    %v610 = vunpack.c.l.b16 %v462
    %v611 = vunpack.c.h.b16 %v462
    %v612 = vunpack.c.l.b16 %v463
    %v613 = vunpack.c.h.b16 %v463
    %v614 = vunpack.c.l.b16 %v464
    %v615 = vunpack.c.h.b16 %v464
    %v616 = vunpack.c.l.b16 %v465
    %v617 = vunpack.c.h.b16 %v465
    %v618 = vunpack.c.l.b16 %v466
    %v619 = vunpack.c.h.b16 %v466
    %v620 = vunpack.c.l.b16 %v467
    %v621 = vunpack.c.h.b16 %v467
    %v622 = vunpack.c.l.b16 %v468
    %v623 = vunpack.c.h.b16 %v468
    %v624 = vunpack.c.l.b16 %v469
    %v625 = vunpack.c.h.b16 %v469
    %v626 = vunpack.c.l.b16 %v470
    %v627 = vunpack.c.h.b16 %v470
    %v628 = vunpack.c.l.b16 %v471
    %v629 = vunpack.c.h.b16 %v471
    %v630 = vunpack.c.l.b16 %v472
    %v631 = vunpack.c.h.b16 %v472
    %v632 = vunpack.c.l.b16 %v473
    %v633 = vunpack.c.h.b16 %v473
    %v634 = vunpack.c.l.b16 %v474
    %v635 = vunpack.c.h.b16 %v474
    %v636 = vunpack.c.l.b16 %v475
    %v637 = vunpack.c.h.b16 %v475
    %v638 = vunpack.c.l.b16 %v476
    %v639 = vunpack.c.h.b16 %v476
    %v640 = vunpack.c.l.b16 %v477
    %v641 = vunpack.c.h.b16 %v477
    %v642 = vunpack.c.l.b16 %v478
    %v643 = vunpack.c.h.b16 %v478
    %v644 = vunpack.c.l.b16 %v479
    %v645 = vunpack.c.h.b16 %v479
    %v646 = vunpack.c.l.b16 %v480
    %v647 = vunpack.c.h.b16 %v480
    %v648 = vunpack.c.l.b16 %v481
    %v649 = vunpack.c.h.b16 %v481
    %v650 = vunpack.c.l.b16 %v482
    %v651 = vunpack.c.h.b16 %v482
    %v652 = vunpack.c.l.b16 %v483
    %v653 = vunpack.c.h.b16 %v483
    %v654 = vunpack.c.l.b16 %v484
    %v655 = vunpack.c.h.b16 %v484
    %v656 = vunpack.c.l.b16 %v485
    %v657 = vunpack.c.h.b16 %v485
    %v658 = vunpack.c.l.b16 %v486
    %v659 = vunpack.c.h.b16 %v486
    %v660 = vunpack.c.l.b16 %v487
    %v661 = vunpack.c.h.b16 %v487
    %v662 = vunpack.c.l.b16 %v488
    %v663 = vunpack.c.h.b16 %v488
    %v664 = vunpack.c.l.b16 %v489
    %v665 = vunpack.c.h.b16 %v489
    %v666 = vunpack.c.l.b16 %v490
    %v667 = vunpack.c.h.b16 %v490
    %v668 = vunpack.c.l.b16 %v491
    %v669 = vunpack.c.h.b16 %v491
    %v670 = vunpack.c.l.b16 %v492
    %v671 = vunpack.c.h.b16 %v492
    %v672 = vunpack.c.l.b16 %v493
    %v673 = vunpack.c.h.b16 %v493
    %v674 = vunpack.c.l.b16 %v494
    %v675 = vunpack.c.h.b16 %v494
    %v676 = vunpack.c.l.b16 %v495
    %v677 = vunpack.c.h.b16 %v495
    %v678 = vunpack.c.l.b16 %v496
    %v679 = vunpack.c.h.b16 %v496
    %v680 = vunpack.c.l.b16 %v497
    %v681 = vunpack.c.h.b16 %v497
    %v682 = vunpack.c.l.b16 %v498
    %v683 = vunpack.c.h.b16 %v498
    %v684 = vunpack.c.l.b16 %v499
    %v685 = vunpack.c.h.b16 %v499
    %v686 = vunpack.c.l.b16 %v500
    %v687 = vunpack.c.h.b16 %v500
    %v688 = vunpack.c.l.b16 %v501
    %v689 = vunpack.c.h.b16 %v501
    %v690 = vunpack.c.l.b16 %v502
    %v691 = vunpack.c.h.b16 %v502
    %v692 = vunpack.c.l.b16 %v503
    %v693 = vunpack.c.h.b16 %v503
    %v694 = vunpack.c.l.b16 %v504
    %v695 = vunpack.c.h.b16 %v504
    %v696 = vunpack.c.l.b16 %v505
    %v697 = vunpack.c.h.b16 %v505
    %v698 = vunpack.c.l.b16 %v506
    %v699 = vunpack.c.h.b16 %v506
    %v700 = vunpack.c.l.b16 %v507
    %v701 = vunpack.c.h.b16 %v507
    %v702 = vunpack.c.l.b16 %v508
    %v703 = vunpack.c.h.b16 %v508
    %v704 = vunpack.c.l.b16 %v509
    %v705 = vunpack.c.h.b16 %v509
    %v706 = vunpack.c.l.b16 %v510
    %v707 = vunpack.c.h.b16 %v510
    %v708 = vunpack.c.l.b16 %v511
    %v709 = vunpack.c.h.b16 %v511
    %v710 = vunpack.c.l.b16 %v512
    %v711 = vunpack.c.h.b16 %v512
    %v712 = vunpack.c.l.b16 %v513
    %v713 = vunpack.c.h.b16 %v513
    %v714 = vunpack.c.l.b16 %v514
    %v715 = vunpack.c.h.b16 %v514
    %v716 = vunpack.c.l.b16 %v515
    %v717 = vunpack.c.h.b16 %v515
    %v718 = vunpack.c.l.b16 %v516
    %v719 = vunpack.c.h.b16 %v516
    %v720 = vunpack.c.l.b16 %v517
    %v721 = vunpack.c.h.b16 %v517
    %v722 = vpack.c.b16 %v596, %v594
    %v723 = vpack.c.b16 %v597, %v595
    %v724 = vpack.c.b16 %v600, %v598
    %v725 = vpack.c.b16 %v601, %v599
    %v726 = vpack.c.b16 %v604, %v602
    %v727 = vpack.c.b16 %v605, %v603
    %v728 = vpack.c.b16 %v608, %v606
    %v729 = vpack.c.b16 %v609, %v607
    %v730 = vpack.c.b16 %v612, %v610
    %v731 = vpack.c.b16 %v613, %v611
    %v732 = vpack.c.b16 %v616, %v614
    %v733 = vpack.c.b16 %v617, %v615
    %v734 = vpack.c.b16 %v620, %v618
    %v735 = vpack.c.b16 %v621, %v619
    %v736 = vpack.c.b16 %v624, %v622
    %v737 = vpack.c.b16 %v625, %v623
    %v738 = vpack.c.b16 %v628, %v626
    %v739 = vpack.c.b16 %v629, %v627
    %v740 = vpack.c.b16 %v632, %v630
    %v741 = vpack.c.b16 %v633, %v631
    %v742 = vpack.c.b16 %v636, %v634
    %v743 = vpack.c.b16 %v637, %v635
    %v744 = vpack.c.b16 %v640, %v638
    %v745 = vpack.c.b16 %v641, %v639
    %v746 = vpack.c.b16 %v644, %v642
    %v747 = vpack.c.b16 %v645, %v643
    %v748 = vpack.c.b16 %v648, %v646
    %v749 = vpack.c.b16 %v649, %v647
    %v750 = vpack.c.b16 %v652, %v650
    %v751 = vpack.c.b16 %v653, %v651
    %v752 = vpack.c.b16 %v656, %v654
    %v753 = vpack.c.b16 %v657, %v655
    %v754 = vpack.c.b16 %v660, %v658
    %v755 = vpack.c.b16 %v661, %v659
    %v756 = vpack.c.b16 %v664, %v662
    %v757 = vpack.c.b16 %v665, %v663
    %v758 = vpack.c.b16 %v668, %v666
    %v759 = vpack.c.b16 %v669, %v667
    %v760 = vpack.c.b16 %v672, %v670
    %v761 = vpack.c.b16 %v673, %v671
    %v762 = vpack.c.b16 %v676, %v674
    %v763 = vpack.c.b16 %v677, %v675
    %v764 = vpack.c.b16 %v680, %v678
    %v765 = vpack.c.b16 %v681, %v679
    %v766 = vpack.c.b16 %v684, %v682
    %v767 = vpack.c.b16 %v685, %v683
    %v768 = vpack.c.b16 %v688, %v686
    %v769 = vpack.c.b16 %v689, %v687
    %v770 = vpack.c.b16 %v692, %v690
    %v771 = vpack.c.b16 %v693, %v691
    %v772 = vpack.c.b16 %v696, %v694
    %v773 = vpack.c.b16 %v697, %v695
    %v774 = vpack.c.b16 %v700, %v698
    %v775 = vpack.c.b16 %v701, %v699
    %v776 = vpack.c.b16 %v704, %v702
    %v777 = vpack.c.b16 %v705, %v703
    %v778 = vpack.c.b16 %v708, %v706
    %v779 = vpack.c.b16 %v709, %v707
    %v780 = vpack.c.b16 %v712, %v710
    %v781 = vpack.c.b16 %v713, %v711
    %v782 = vpack.c.b16 %v716, %v714
    %v783 = vpack.c.b16 %v717, %v715
    %v784 = vpack.c.b16 %v720, %v718
    %v785 = vpack.c.b16 %v721, %v719
    %850 = vmatprep.subr.bf16.mxu0 %v737
    %851 = vmatpush1.bf16.msra.mxu0 %v736
    %852 = vmatprep.subr.bf16.mxu0 %v735
    %853 = vmatpush1.bf16.msra.mxu0 %v734
    %854 = vmatprep.subr.bf16.mxu0 %v733
    %855 = vmatpush1.bf16.msra.mxu0 %v732
    %856 = vmatprep.subr.bf16.mxu0 %v731
    %857 = vmatpush1.bf16.msra.mxu0 %v730
    %858 = vmatprep.subr.bf16.mxu0 %v729
    %859 = vmatpush1.bf16.msra.mxu0 %v728
    %860 = vmatprep.subr.bf16.mxu0 %v727
    %861 = vmatpush1.bf16.msra.mxu0 %v726
    %862 = vmatprep.subr.bf16.mxu0 %v725
    %863 = vmatpush1.bf16.msra.mxu0 %v724
    %864 = vmatprep.subr.bf16.mxu0 %v723
    %865 = vmatpush1.bf16.msra.mxu0 %v722
    %866 = vmatprep.subr.bf16.mxu0 %v753
    %867 = vmatpush2.bf16.msra.mxu0 %v752
    %868 = vmatprep.subr.bf16.mxu0 %v751
    %869 = vmatpush2.bf16.msra.mxu0 %v750
    %870 = vmatprep.subr.bf16.mxu0 %v749
    %871 = vmatpush2.bf16.msra.mxu0 %v748
    %872 = vmatprep.subr.bf16.mxu0 %v747
    %873 = vmatpush2.bf16.msra.mxu0 %v746
    %874 = vmatprep.subr.bf16.mxu0 %v745
    %875 = vmatpush2.bf16.msra.mxu0 %v744
    %876 = vmatprep.subr.bf16.mxu0 %v743
    %877 = vmatpush2.bf16.msra.mxu0 %v742
    %878 = vmatprep.subr.bf16.mxu0 %v741
    %879 = vmatpush2.bf16.msra.mxu0 %v740
    %880 = vmatprep.subr.bf16.mxu0 %v739
    %881 = vmatpush2.bf16.msra.mxu0 %v738
    %882 = vmatprep.mubr.bf16.mxu0 %v447
    %883 = vmatmul.mubr.bf16.gmra.mxu0 %v446
    %v884 = vpop.f32.mrf.mxu0
    %v885 = vadd.f32 %v523, %v884
    %v886 = vpop.f32.mrf.mxu0
    %v887 = vadd.f32 %v527, %v886
    %v888 = vpop.f32.mrf.mxu0
    %v889 = vadd.f32 %v523, %v888
    %v890 = vpop.f32.mrf.mxu0
    %v891 = vadd.f32 %v527, %v890
    %892 = vmatprep.mubr.bf16.mxu0 %v451
    %893 = vmatmul.mubr.bf16.gmra.mxu0 %v450
    %v894 = vpop.f32.mrf.mxu0
    %v895 = vadd.f32 %v523, %v894
    %v896 = vpop.f32.mrf.mxu0
    %v897 = vadd.f32 %v527, %v896
    %v898 = vpop.f32.mrf.mxu0
    %v899 = vadd.f32 %v523, %v898
    %v900 = vpop.f32.mrf.mxu0
    %v901 = vadd.f32 %v527, %v900
    %902 = vdwg.mxu0
    %903 = vmatprep.subr.bf16.mxu0 %v769
    %904 = vmatpush1.bf16.msra.mxu0 %v768
    %905 = vmatprep.subr.bf16.mxu0 %v767
    %906 = vmatpush1.bf16.msra.mxu0 %v766
    %907 = vmatprep.subr.bf16.mxu0 %v765
    %908 = vmatpush1.bf16.msra.mxu0 %v764
    %909 = vmatprep.subr.bf16.mxu0 %v763
    %910 = vmatpush1.bf16.msra.mxu0 %v762
    %911 = vmatprep.subr.bf16.mxu0 %v761
    %912 = vmatpush1.bf16.msra.mxu0 %v760
    %913 = vmatprep.subr.bf16.mxu0 %v759
    %914 = vmatpush1.bf16.msra.mxu0 %v758
    %915 = vmatprep.subr.bf16.mxu0 %v757
    %916 = vmatpush1.bf16.msra.mxu0 %v756
    %917 = vmatprep.subr.bf16.mxu0 %v755
    %918 = vmatpush1.bf16.msra.mxu0 %v754
    %919 = vmatprep.subr.bf16.mxu0 %v785
    %920 = vmatpush2.bf16.msra.mxu0 %v784
    %921 = vmatprep.subr.bf16.mxu0 %v783
    %922 = vmatpush2.bf16.msra.mxu0 %v782
    %923 = vmatprep.subr.bf16.mxu0 %v781
    %924 = vmatpush2.bf16.msra.mxu0 %v780
    %925 = vmatprep.subr.bf16.mxu0 %v779
    %926 = vmatpush2.bf16.msra.mxu0 %v778
    %927 = vmatprep.subr.bf16.mxu0 %v777
    %928 = vmatpush2.bf16.msra.mxu0 %v776
    %929 = vmatprep.subr.bf16.mxu0 %v775
    %930 = vmatpush2.bf16.msra.mxu0 %v774
    %931 = vmatprep.subr.bf16.mxu0 %v773
    %932 = vmatpush2.bf16.msra.mxu0 %v772
    %933 = vmatprep.subr.bf16.mxu0 %v771
    %934 = vmatpush2.bf16.msra.mxu0 %v770
    %935 = vmatprep.mubr.bf16.mxu0 %v449
    %936 = vmatmul.mubr.bf16.gmra.mxu0 %v448
    %v937 = vpop.f32.mrf.mxu0
    %v938 = vadd.f32 %v885, %v937
    %v939 = vpop.f32.mrf.mxu0
    %v940 = vadd.f32 %v887, %v939
    %v941 = vpop.f32.mrf.mxu0
    %v942 = vadd.f32 %v889, %v941
    %v943 = vpop.f32.mrf.mxu0
    %v944 = vadd.f32 %v891, %v943
    %945 = vmatprep.mubr.bf16.mxu0 %v453
    %946 = vmatmul.mubr.bf16.gmra.mxu0 %v452
    %v947 = vpop.f32.mrf.mxu0
    %v948 = vadd.f32 %v895, %v947
    %v949 = vpop.f32.mrf.mxu0
    %v950 = vadd.f32 %v897, %v949
    %v951 = vpop.f32.mrf.mxu0
    %v952 = vadd.f32 %v899, %v951
    %v953 = vpop.f32.mrf.mxu0
    %v954 = vadd.f32 %v901, %v953
    %955 = vdwg.mxu0
    %v956 = vmax.f32 %v938, 0.0
    %v957 = vmax.f32 %v940, 0.0
    %v958 = vmax.f32 %v942, 0.0
    %v959 = vmax.f32 %v944, 0.0
    %v960 = vmax.f32 %v948, 0.0
    %v961 = vmax.f32 %v950, 0.0
    %v962 = vmax.f32 %v952, 0.0
    %v963 = vmax.f32 %v954, 0.0
    %v964 = vpack.c.bf16 %v958, %v956
    %v965 = vpack.c.bf16 %v959, %v957
    %v966 = vpack.c.bf16 %v962, %v960
    %v967 = vpack.c.bf16 %v963, %v961
    %v968 = vld [vmem:[#allocation10] sm:$0xf]
    %v969 = vld [vmem:[#allocation10 + $0x4] sm:$0xf]
    %v970 = vld [vmem:[#allocation10 + $0x8] sm:$0xf]
    %v971 = vld [vmem:[#allocation10 + $0xc] sm:$0xf]
    %v972 = vld [vmem:[#allocation10 + $0x10] sm:$0xf]
    %v973 = vld [vmem:[#allocation10 + $0x14] sm:$0xf]
    %v974 = vld [vmem:[#allocation10 + $0x18] sm:$0xf]
    %v975 = vld [vmem:[#allocation10 + $0x1c] sm:$0xf]
    %v976 = vld [vmem:[#allocation10 + $0x20] sm:$0xf]
    %v977 = vld [vmem:[#allocation10 + $0x24] sm:$0xf]
    %v978 = vld [vmem:[#allocation10 + $0x28] sm:$0xf]
    %v979 = vld [vmem:[#allocation10 + $0x2c] sm:$0xf]
    %v980 = vld [vmem:[#allocation10 + $0x30] sm:$0xf]
    %v981 = vld [vmem:[#allocation10 + $0x34] sm:$0xf]
    %v982 = vld [vmem:[#allocation10 + $0x38] sm:$0xf]
    %v983 = vld [vmem:[#allocation10 + $0x3c] sm:$0xf]
    %v984 = vld [vmem:[#allocation10 + $0x40] sm:$0xf]
    %v985 = vld [vmem:[#allocation10 + $0x44] sm:$0xf]
    %v986 = vld [vmem:[#allocation10 + $0x48] sm:$0xf]
    %v987 = vld [vmem:[#allocation10 + $0x4c] sm:$0xf]
    %v988 = vld [vmem:[#allocation10 + $0x50] sm:$0xf]
    %v989 = vld [vmem:[#allocation10 + $0x54] sm:$0xf]
    %v990 = vld [vmem:[#allocation10 + $0x58] sm:$0xf]
    %v991 = vld [vmem:[#allocation10 + $0x5c] sm:$0xf]
    %v992 = vld [vmem:[#allocation10 + $0x60] sm:$0xf]
    %v993 = vld [vmem:[#allocation10 + $0x64] sm:$0xf]
    %v994 = vld [vmem:[#allocation10 + $0x68] sm:$0xf]
    %v995 = vld [vmem:[#allocation10 + $0x6c] sm:$0xf]
    %v996 = vld [vmem:[#allocation10 + $0x70] sm:$0xf]
    %v997 = vld [vmem:[#allocation10 + $0x74] sm:$0xf]
    %v998 = vld [vmem:[#allocation10 + $0x78] sm:$0xf]
    %v999 = vld [vmem:[#allocation10 + $0x7c] sm:$0xf]
    %v1000 = vld [vmem:[%s6] sm:$0x1]
    %v1002 = vlaneseq
    %v1003 = vshrl.u32 %v1002, 7
    %v1004 = vsub.s32 0, %v1003
    %v1005 = vrot.slane %v1000, %v1004
    %v1039 = vunpack.c.l.b16 %v968
    %v1040 = vunpack.c.l.b16 %v969
    %v1041 = vunpack.c.l.b16 %v970
    %v1042 = vunpack.c.l.b16 %v971
    %v1043 = vunpack.c.l.b16 %v972
    %v1044 = vunpack.c.l.b16 %v973
    %v1045 = vunpack.c.l.b16 %v974
    %v1046 = vunpack.c.l.b16 %v975
    %v1047 = vunpack.c.l.b16 %v976
    %v1048 = vunpack.c.l.b16 %v977
    %v1049 = vunpack.c.l.b16 %v978
    %v1050 = vunpack.c.l.b16 %v979
    %v1051 = vunpack.c.l.b16 %v980
    %v1052 = vunpack.c.l.b16 %v981
    %v1053 = vunpack.c.l.b16 %v982
    %v1054 = vunpack.c.l.b16 %v983
    %v1055 = vunpack.c.l.b16 %v984
    %v1056 = vunpack.c.l.b16 %v985
    %v1057 = vunpack.c.l.b16 %v986
    %v1058 = vunpack.c.l.b16 %v987
    %v1059 = vunpack.c.l.b16 %v988
    %v1060 = vunpack.c.l.b16 %v989
    %v1061 = vunpack.c.l.b16 %v990
    %v1062 = vunpack.c.l.b16 %v991
    %v1063 = vunpack.c.l.b16 %v992
    %v1064 = vunpack.c.l.b16 %v993
    %v1065 = vunpack.c.l.b16 %v994
    %v1066 = vunpack.c.l.b16 %v995
    %v1067 = vunpack.c.l.b16 %v996
    %v1068 = vunpack.c.l.b16 %v997
    %v1069 = vunpack.c.l.b16 %v998
    %v1070 = vunpack.c.l.b16 %v999
    %v1071 = vpack.c.b16 %v1040, %v1039
    %v1072 = vpack.c.b16 %v1042, %v1041
    %v1073 = vpack.c.b16 %v1044, %v1043
    %v1074 = vpack.c.b16 %v1046, %v1045
    %v1075 = vpack.c.b16 %v1048, %v1047
    %v1076 = vpack.c.b16 %v1050, %v1049
    %v1077 = vpack.c.b16 %v1052, %v1051
    %v1078 = vpack.c.b16 %v1054, %v1053
    %v1079 = vpack.c.b16 %v1056, %v1055
    %v1080 = vpack.c.b16 %v1058, %v1057
    %v1081 = vpack.c.b16 %v1060, %v1059
    %v1082 = vpack.c.b16 %v1062, %v1061
    %v1083 = vpack.c.b16 %v1064, %v1063
    %v1084 = vpack.c.b16 %v1066, %v1065
    %v1085 = vpack.c.b16 %v1068, %v1067
    %v1086 = vpack.c.b16 %v1070, %v1069
    %1103 = vmatprep.subr.bf16.mxu0 0
    %1104 = vmatpush1.bf16.msra.mxu0 %v1078
    %1105 = vmatprep.subr.bf16.mxu0 0
    %1106 = vmatpush1.bf16.msra.mxu0 %v1077
    %1107 = vmatprep.subr.bf16.mxu0 0
    %1108 = vmatpush1.bf16.msra.mxu0 %v1076
    %1109 = vmatprep.subr.bf16.mxu0 0
    %1110 = vmatpush1.bf16.msra.mxu0 %v1075
    %1111 = vmatprep.subr.bf16.mxu0 0
    %1112 = vmatpush1.bf16.msra.mxu0 %v1074
    %1113 = vmatprep.subr.bf16.mxu0 0
    %1114 = vmatpush1.bf16.msra.mxu0 %v1073
    %1115 = vmatprep.subr.bf16.mxu0 0
    %1116 = vmatpush1.bf16.msra.mxu0 %v1072
    %1117 = vmatprep.subr.bf16.mxu0 0
    %1118 = vmatpush1.bf16.msra.mxu0 %v1071
    %1119 = vmatprep.subr.bf16.mxu0 0
    %1120 = vmatpush2.bf16.msra.mxu0 %v1086
    %1121 = vmatprep.subr.bf16.mxu0 0
    %1122 = vmatpush2.bf16.msra.mxu0 %v1085
    %1123 = vmatprep.subr.bf16.mxu0 0
    %1124 = vmatpush2.bf16.msra.mxu0 %v1084
    %1125 = vmatprep.subr.bf16.mxu0 0
    %1126 = vmatpush2.bf16.msra.mxu0 %v1083
    %1127 = vmatprep.subr.bf16.mxu0 0
    %1128 = vmatpush2.bf16.msra.mxu0 %v1082
    %1129 = vmatprep.subr.bf16.mxu0 0
    %1130 = vmatpush2.bf16.msra.mxu0 %v1081
    %1131 = vmatprep.subr.bf16.mxu0 0
    %1132 = vmatpush2.bf16.msra.mxu0 %v1080
    %1133 = vmatprep.subr.bf16.mxu0 0
    %1134 = vmatpush2.bf16.msra.mxu0 %v1079
    %1135 = vmatprep.mubr.bf16.mxu0 %v965
    %1136 = vmatmul.mubr.bf16.gmra.mxu0 %v964
    %v1137 = vpop.f32.mrf.mxu0
    %v1138 = vadd.f32 %v1005, %v1137
    %v1139 = vpop.f32.mrf.mxu0
    %v1140 = vpop.f32.mrf.mxu0
    %v1141 = vadd.f32 %v1005, %v1140
    %v1142 = vpop.f32.mrf.mxu0
    %1143 = vmatprep.mubr.bf16.mxu0 %v967
    %1144 = vmatmul.mubr.bf16.gmra.mxu0 %v966
    %v1145 = vpop.f32.mrf.mxu0
    %v1146 = vadd.f32 %v1005, %v1145
    %v1147 = vpop.f32.mrf.mxu0
    %v1148 = vpop.f32.mrf.mxu0
    %v1149 = vadd.f32 %v1005, %v1148
    %v1150 = vpop.f32.mrf.mxu0
    %1151 = vdwg.mxu0
    %1152 = vst [vmem:[#allocation11] sm:$0xff] %v1138
    %1153 = vst [vmem:[#allocation11 + $0x8] sm:$0xff] %v1141
    %1154 = vst [vmem:[#allocation11 + $0x10] sm:$0xff] %v1146
    %1155 = vst [vmem:[#allocation11 + $0x18] sm:$0xff] %v1149
    // Predicated region
    $region50: #{tpu_custom_call.1} parent=1 // pred_check
      _
    $region51: #{tpu_custom_call.1} parent=1 // pred_check_branch
      %1157 = sbr.rel (0) target = $region53
    $region52: #{tpu_custom_call.1} parent=1 // pred_region
      %s1159 = ssub.s32 512, 512
      %1160 = vsyncadd [#allocation4], %s1159
      %s1161 = sshll.u32 [#allocation11], 4
      %s1162 = int_to_ptr.vmem [resolvable:$true] %s1161
      %1167 = dma.vmem_to_hbm [thread:$0]  %s1162, 512, %s7, [#allocation4], 128, 128, 8
    $region53: #{tpu_custom_call.1} parent=1 // pred_fallthru
      _
    // Predicated region
    $region54: #{tpu_custom_call.1} parent=1 // pred_check
      _
    $region55: #{tpu_custom_call.1} parent=1 // pred_check_branch
      %1169 = sbr.rel (0) target = $region57
    $region56: #{tpu_custom_call.1} parent=1 // pred_region
      %1170 = dma.done [#allocation4], 512
    $region57: #{tpu_custom_call.1} parent=1 // pred_fallthru
      _
    %1171 = vsyncpa [#allocation3], 1
    %1172 = vsyncpa [#allocation6], 1
    %1173 = vsyncpa [#allocation9], 1
    %1174 = vsyncpa [#allocation4], 1

</llo_original>
